<compile_context>
chip_gen: v7x
topology: tpu7x:2x2x1
jax: 0.10.0
libtpu: 0.0.40
codegen_flags: <defaults>
</compile_context>

<pallas_src>
import functools

import jax
import jax.numpy as jnp
from jax import lax
from jax.experimental import pallas as pl
from jax.experimental.pallas import tpu as pltpu

_MIB = 1024 * 1024


def _cdiv(a, b):
    return (a + b - 1) // b


def _ceil_to(v, m):
    return _cdiv(v, m) * m


def _vmem_capacity_bytes():
    """Physical per-core VMEM (generation aware); conservative fallback (v7x)."""
    try:
        info = pltpu.get_tpu_info()
        cap = getattr(info, "vmem_capacity_bytes", None)
        if cap:
            return int(cap)
    except Exception:
        pass
    return 64 * _MIB  # v7x has the smallest VMEM of current generations


def _choose_s_tile(s_total, channels, itemsize, per_buffer_bytes):
    """Spatial (lane) tile for the fused path, sized by BYTES.

    * Whole per-item (C, S) slab fits one pipelined buffer -> use it
      (one DMA per item, grid (N, 1)).
    * Otherwise the largest 128-multiple of lanes fitting per_buffer_bytes,
      preferring an exact divisor of S so no ragged-tail masking is needed.
    """
    if channels * s_total * itemsize <= per_buffer_bytes:
        return s_total
    cap = (per_buffer_bytes // (channels * itemsize)) // 128 * 128
    cap = max(128, cap)
    if s_total <= cap:
        return s_total
    d = cap
    while d >= 128:
        if s_total % d == 0:
            break
        d -= 128
    if d >= max(512, cap // 4) and s_total % d == 0:
        return d
    return cap


def _split_tiling(s_total, cap_lanes):
    """Tiling for the two-way spatial split (odd N).

    Returns (s_tile, blocks_per_half) such that the total block count
    2*blocks_per_half is even, covers S, and the last block is non-empty.
    Requires s_total > 128.  s_tile is a multiple of 128.
    """
    bph = max(1, _cdiv(_cdiv(s_total, 2), max(cap_lanes, 128)))
    while bph > 1:
        s_tile = _ceil_to(_cdiv(s_total, 2 * bph), 128)
        if (2 * bph - 1) * s_tile < s_total:
            return s_tile, bph
        bph -= 1
    return _ceil_to(_cdiv(s_total, 2), 128), 1


def _accumulate_tile(x_ref, acc_ref, g, *, tail, total_blocks):
    """acc_ref (C,1) f32 += spatial sum of the current (C, s_tile) tile.

    `tail` is None when every block is full; otherwise it is the number of
    valid lanes in the LAST block.  The iota/where mask runs only on that
    block (pl.when); every other block accumulates the unmasked sum.
    """
    x = x_ref[...].astype(jnp.float32)
    if tail is None:
        acc_ref[...] += jnp.sum(x, axis=-1, keepdims=True)
    else:
        @pl.when(g < total_blocks - 1)
        def _full():
            acc_ref[...] += jnp.sum(x, axis=-1, keepdims=True)

        @pl.when(g == total_blocks - 1)
        def _masked():
            lane = lax.broadcasted_iota(jnp.int32, x.shape, 1)
            xm = jnp.where(lane < tail, x, 0.0)
            acc_ref[...] += jnp.sum(xm, axis=-1, keepdims=True)


def _bsr_fused_kernel(x_ref, wt_ref, b_ref, scores_ref, bsr_ref, acc_ref, *,
                      s_total, total_blocks, tail):
    """grid = (N, S_blocks).  Streams spatial tiles, accumulates per-item
    channel sums in VMEM, finalizes mean / bsr / classifier on the last step.

    x_ref:      (C, s_tile)   input tile (spatial positions on lanes)
    wt_ref:     (C, n_way)    classifier weight, pre-transposed
    b_ref:      (1, n_way)    classifier bias
    scores_ref: (1, n_way)    per-item scores (written on last spatial step)
    bsr_ref:    (1, 1)        per-item partial of ||feature||_F^2
    acc_ref:    (C, 1) f32    running spatial sum for the current item
    """
    s_idx = pl.program_id(1)

    @pl.when(s_idx == 0)
    def _init():
        acc_ref[...] = jnp.zeros_like(acc_ref)

    _accumulate_tile(x_ref, acc_ref, s_idx, tail=tail, total_blocks=total_blocks)

    @pl.when(s_idx == total_blocks - 1)
    def _finalize():
        feat = acc_ref[...] * (1.0 / s_total)          # (C, 1) mean pool
        # bsr: sum of squared singular values of feature^T == ||feature||_F^2
        bsr_ref[...] = jnp.sum(feat * feat, keepdims=True)
        # scores = feature @ W^T + b (tiny, once per item, no transposes)
        scores_ref[...] = (jnp.sum(feat * wt_ref[...], axis=0, keepdims=True)
                           + b_ref[...])


def _bsr_partial_kernel(x_ref, psum_ref, *, blocks_per_half, total_blocks, tail):
    """grid = (2, N, S_blocks_per_half).  Two-way spatial split so both v7x
    TensorCores get work even when N is odd; each (half, item) accumulates
    its (C, 1) partial channel sum directly into its resident output block.
    The tiny mean / bsr / classifier finalize runs in the wrapper."""
    half = pl.program_id(0)
    s_idx = pl.program_id(2)
    g = half * blocks_per_half + s_idx            # global spatial block index

    @pl.when(s_idx == 0)
    def _init():
        psum_ref[...] = jnp.zeros_like(psum_ref)

    _accumulate_tile(x_ref, psum_ref, g, tail=tail, total_blocks=total_blocks)


def bsr_single_forward(x_ncdhw, weight, bias, *, max_tile_bytes=None):
    """x_ncdhw: (N, C, D, H, W); weight: (n_way, C); bias: (n_way,).

    Returns (scores (N, n_way) f32, bsr scalar f32)."""
    n = int(x_ncdhw.shape[0])
    c = int(x_ncdhw.shape[1])
    s = 1
    for d in x_ncdhw.shape[2:]:
        s *= int(d)
    n_way = int(weight.shape[0])

    x_flat = x_ncdhw.reshape(n, c, s)              # contiguous -> free reshape
    wt = weight.astype(jnp.float32).T              # (C, n_way), tiny wrapper op
    b2d = bias.astype(jnp.float32).reshape(1, n_way)
    itemsize = x_flat.dtype.itemsize

    vmem_cap = _vmem_capacity_bytes()
    # Per pipelined input buffer: up to 8 MiB (measured reductions saturate HBM
    # roofline well below this), generation-aware cap so 2 buffers + residents
    # stay far inside even v7x's 64 MiB VMEM.
    per_buf = min(8 * _MIB, vmem_cap // 8)
    if max_tile_bytes is not None:                 # test hook: force tiling
        per_buf = max(128 * c * itemsize, min(per_buf, int(max_tile_bytes)))

    cost = pl.CostEstimate(
        flops=n * c * s + 3 * n * c * n_way + 2 * n * c,
        transcendentals=0,
        bytes_accessed=int(x_flat.size * itemsize
                           + (wt.size + b2d.size + n * n_way + n) * 4),
    )

    # Two-way spatial split keeps both v7x TensorCores busy when N is odd
    # (incl. N == 1); near-neutral on single-TC chips (v5e/v6e).
    use_split = (n % 2 == 1) and (s > 128)

    if not use_split:
        s_tile = _choose_s_tile(s, c, itemsize, per_buf)
        total_blocks = _cdiv(s, s_tile)
        tail = s - (total_blocks - 1) * s_tile
        tail = None if tail == s_tile else tail

        x_buf_bytes = c * s_tile * itemsize
        resident = (c * n_way + 2 * n_way + c + 2 * (n_way + 1)) * 4
        vmem_limit = int(2.5 * x_buf_bytes) + 2 * resident + 2 * _MIB
        vmem_limit = int(min(max(vmem_limit, 16 * _MIB), int(vmem_cap * 0.9)))

        kernel = functools.partial(_bsr_fused_kernel, s_total=s,
                                   total_blocks=total_blocks, tail=tail)

        scores3, bsr_part = pl.pallas_call(
            kernel,
            out_shape=(
                jax.ShapeDtypeStruct((n, 1, n_way), jnp.float32),
                jax.ShapeDtypeStruct((n, 1, 1), jnp.float32),
            ),
            grid_spec=pltpu.PrefetchScalarGridSpec(
                num_scalar_prefetch=0,
                grid=(n, total_blocks),
                in_specs=[
                    # NOTE: pipeline_mode=pl.Buffered(3) only if a v7x trace
                    # shows exposed DMA gaps at grid-step boundaries.
                    pl.BlockSpec((None, c, s_tile), lambda ni, si: (ni, 0, si)),
                    pl.BlockSpec((c, n_way), lambda ni, si: (0, 0)),
                    pl.BlockSpec((1, n_way), lambda ni, si: (0, 0)),
                ],
                out_specs=(
                    pl.BlockSpec((None, 1, n_way), lambda ni, si: (ni, 0, 0)),
                    pl.BlockSpec((None, 1, 1), lambda ni, si: (ni, 0, 0)),
                ),
                scratch_shapes=[pltpu.VMEM((c, 1), jnp.float32)],
            ),
            compiler_params=pltpu.CompilerParams(
                dimension_semantics=("parallel", "arbitrary"),
                vmem_limit_bytes=vmem_limit),
            cost_estimate=cost,
        )(x_flat, wt, b2d)

        scores = scores3.reshape(n, n_way)
        bsr = jnp.sum(bsr_part)                    # reduce per-item partials
        return scores, bsr

    # ---- odd-N path: split the spatial range in half across a parallel axis
    cap_lanes = max(128, (per_buf // (c * itemsize)) // 128 * 128)
    s_tile, bph = _split_tiling(s, cap_lanes)
    total_blocks = 2 * bph
    tail = s - (total_blocks - 1) * s_tile
    tail = None if tail == s_tile else tail

    x_buf_bytes = c * s_tile * itemsize
    vmem_limit = int(2.5 * x_buf_bytes) + 4 * c * 4 + 2 * _MIB
    vmem_limit = int(min(max(vmem_limit, 16 * _MIB), int(vmem_cap * 0.9)))

    kernel = functools.partial(_bsr_partial_kernel, blocks_per_half=bph,
                               total_blocks=total_blocks, tail=tail)

    psums = pl.pallas_call(
        kernel,
        out_shape=jax.ShapeDtypeStruct((2 * n, c, 1), jnp.float32),
        grid_spec=pltpu.PrefetchScalarGridSpec(
            num_scalar_prefetch=0,
            grid=(2, n, bph),
            in_specs=[
                pl.BlockSpec((None, c, s_tile),
                             lambda h, ni, si: (ni, 0, h * bph + si)),
            ],
            out_specs=pl.BlockSpec((None, c, 1),
                                   lambda h, ni, si: (h * n + ni, 0, 0)),
        ),
        compiler_params=pltpu.CompilerParams(
            dimension_semantics=("parallel", "parallel", "arbitrary"),
            vmem_limit_bytes=vmem_limit),
        cost_estimate=cost,
    )(x_flat)

    sums = psums[:n] + psums[n:]                   # (N, C, 1) combine halves
    feat = sums[:, :, 0] * (1.0 / s)               # (N, C) mean-pooled feature
    scores = feat @ wt + b2d                       # tiny (N, n_way) matmul
    bsr = jnp.sum(feat * feat)                     # == sum(svd(feat.T).s ** 2)
    return scores, bsr


if __name__ == "__main__":
    # --- Test 1: even N, per-item slab fits one buffer (grid (N, 1)) ---------
    N, C, D, H, W = 2, 32, 16, 16, 16              # S = 4096
    n_way = 5
    key = jax.random.PRNGKey(0)
    kx, kw = jax.random.split(key)
    x = jax.random.normal(kx, (N, C, D, H, W), dtype=jnp.float32)
    weight = 0.01 * jax.random.normal(kw, (n_way, C), dtype=jnp.float32)
    bias = jnp.zeros((n_way,), dtype=jnp.float32)

    scores, bsr = bsr_single_forward(x, weight, bias)
    jax.block_until_ready((scores, bsr))

    feat_ref = jnp.mean(x.reshape(N, C, -1), axis=-1)
    scores_ref = feat_ref @ weight.T + bias
    s_vals = jnp.linalg.svd(feat_ref.T, compute_uv=False)
    bsr_ref = jnp.sum(s_vals ** 2)
    assert scores.shape == (N, n_way)
    assert jnp.allclose(scores, scores_ref, atol=1e-5), "scores mismatch"
    assert jnp.allclose(bsr, bsr_ref, atol=1e-4, rtol=1e-4), "bsr mismatch"

    # --- Test 2: forced tiling with a ragged (masked) last spatial tile ------
    N2, C2, D2, H2, W2, n_way2 = 2, 16, 17, 16, 8, 5   # S = 2176 = 17*128
    k2x, k2w = jax.random.split(jax.random.PRNGKey(1))
    x2 = jax.random.normal(k2x, (N2, C2, D2, H2, W2), dtype=jnp.float32)
    w2 = 0.01 * jax.random.normal(k2w, (n_way2, C2), dtype=jnp.float32)
    b2 = jnp.zeros((n_way2,), dtype=jnp.float32)
    sc2, bsr2 = bsr_single_forward(x2, w2, b2, max_tile_bytes=64 * 1024)
    jax.block_until_ready((sc2, bsr2))
    f2 = jnp.mean(x2.reshape(N2, C2, -1), axis=-1)
    assert jnp.allclose(sc2, f2 @ w2.T + b2, atol=1e-5), "tiled scores mismatch"
    assert jnp.allclose(bsr2, jnp.sum(f2 * f2), atol=1e-4, rtol=1e-4), "tiled bsr mismatch"

    # --- Test 3: odd N -> two-way spatial split (both v7x cores get work) ----
    N3, C3, D3, H3, W3, n_way3 = 3, 16, 8, 8, 9, 5     # S = 576
    k3x, k3w = jax.random.split(jax.random.PRNGKey(2))
    x3 = jax.random.normal(k3x, (N3, C3, D3, H3, W3), dtype=jnp.float32)
    w3 = 0.01 * jax.random.normal(k3w, (n_way3, C3), dtype=jnp.float32)
    b3 = jnp.zeros((n_way3,), dtype=jnp.float32)
    sc3, bsr3 = bsr_single_forward(x3, w3, b3)
    jax.block_until_ready((sc3, bsr3))
    f3 = jnp.mean(x3.reshape(N3, C3, -1), axis=-1)
    assert jnp.allclose(sc3, f3 @ w3.T + b3, atol=1e-5), "split scores mismatch"
    assert jnp.allclose(bsr3, jnp.sum(f3 * f3), atol=1e-4, rtol=1e-4), "split bsr mismatch"

    print("KERNEL_OK")
</pallas_src>

<mosaic_0001>
module attributes {stable_mosaic.version = 11 : i64} {
  func.func @_bsr_fused_kernel(%arg0: i32, %arg1: i32, %arg2: memref<1x32x4096xf32, #tpu.memory_space<vmem>>, %arg3: memref<32x5xf32, #tpu.memory_space<vmem>>, %arg4: memref<1x5xf32, #tpu.memory_space<vmem>>, %arg5: memref<1x1x5xf32, #tpu.memory_space<vmem>>, %arg6: memref<1x1x1xf32, #tpu.memory_space<vmem>>, %arg7: memref<32x1xf32, #tpu.memory_space<vmem>>) attributes {dimension_semantics = [#tpu.dimension_semantics<parallel>, #tpu.dimension_semantics<arbitrary>], iteration_bounds = array<i64: 2, 1>, scalar_prefetch = 0 : i64, scratch_operands = 1 : i64, tpu.core_type = #tpu.core_type<tc>, window_params = [{transform_indices = @transform_0, window_bounds = array<i64: 1, 32, 4096>}, {pipeline_mode = #tpu.pipeline_mode<synchronous>, transform_indices = @transform_1, window_bounds = array<i64: 32, 5>}, {pipeline_mode = #tpu.pipeline_mode<synchronous>, transform_indices = @transform_2, window_bounds = array<i64: 1, 5>}, {transform_indices = @transform_3, window_bounds = array<i64: 1, 1, 5>}, {transform_indices = @transform_4, window_bounds = array<i64: 1, 1, 1>}]} {
    %c0_i32 = arith.constant 0 : i32
    %0 = arith.cmpi eq, %arg1, %c0_i32 : i32
    %1 = arith.extui %0 : i1 to i32
    %c0_i32_0 = arith.constant 0 : i32
    %2 = arith.cmpi ne, %1, %c0_i32_0 : i32
    scf.if %2 {
      %cst_9 = arith.constant 0.000000e+00 : f32
      %13 = vector.broadcast %cst_9 : f32 to vector<32x1xf32>
      %c0_10 = arith.constant 0 : index
      %c0_11 = arith.constant 0 : index
      %14 = vector.load %arg7[%c0_10, %c0_11] : memref<32x1xf32, #tpu.memory_space<vmem>>, vector<32x1xf32>
      tpu.vector_store %arg7[%c0_10, %c0_11], %13 {strides = array<i32>} : memref<32x1xf32, #tpu.memory_space<vmem>>, vector<32x1xf32>,
    } else {
    }
    %c0 = arith.constant 0 : index
    %c0_1 = arith.constant 0 : index
    %c0_2 = arith.constant 0 : index
    %3 = vector.load %arg2[%c0, %c0_1, %c0_2] : memref<1x32x4096xf32, #tpu.memory_space<vmem>>, vector<1x32x4096xf32>
    %4 = vector.shape_cast %3 : vector<1x32x4096xf32> to vector<32x4096xf32>
    %c0_3 = arith.constant 0 : index
    %c0_4 = arith.constant 0 : index
    %5 = vector.load %arg7[%c0_3, %c0_4] : memref<32x1xf32, #tpu.memory_space<vmem>>, vector<32x1xf32>
    %cst = arith.constant dense<0.000000e+00> : vector<32xf32>
    %6 = vector.multi_reduction <add>, %4, %cst [1] : vector<32x4096xf32> to vector<32xf32>
    %7 = vector.shape_cast %6 : vector<32xf32> to vector<32x1xf32>
    %8 = arith.addf %5, %7 : vector<32x1xf32>
    %c0_5 = arith.constant 0 : index
    %c0_6 = arith.constant 0 : index
    %9 = vector.load %arg7[%c0_5, %c0_6] : memref<32x1xf32, #tpu.memory_space<vmem>>, vector<32x1xf32>
    tpu.vector_store %arg7[%c0_5, %c0_6], %8 {strides = array<i32>} : memref<32x1xf32, #tpu.memory_space<vmem>>, vector<32x1xf32>,
    %c0_i32_7 = arith.constant 0 : i32
    %10 = arith.cmpi eq, %arg1, %c0_i32_7 : i32
    %11 = arith.extui %10 : i1 to i32
    %c0_i32_8 = arith.constant 0 : i32
    %12 = arith.cmpi ne, %11, %c0_i32_8 : i32
    scf.if %12 {
      %c0_9 = arith.constant 0 : index
      %c0_10 = arith.constant 0 : index
      %13 = vector.load %arg7[%c0_9, %c0_10] : memref<32x1xf32, #tpu.memory_space<vmem>>, vector<32x1xf32>
      %cst_11 = arith.constant 2.44140625E-4 : f32
      %14 = vector.broadcast %cst_11 : f32 to vector<32x1xf32>
      %15 = arith.mulf %13, %14 : vector<32x1xf32>
      %16 = arith.mulf %15, %15 : vector<32x1xf32>
      %17 = vector.shape_cast %16 : vector<32x1xf32> to vector<1x32x1xf32>
      %cst_12 = arith.constant dense<0.000000e+00> : vector<1xf32>
      %18 = vector.multi_reduction <add>, %17, %cst_12 [1, 2] : vector<1x32x1xf32> to vector<1xf32>
      %19 = vector.shape_cast %18 : vector<1xf32> to vector<1x1x1xf32>
      %20 = vector.extract %19[0, 0, 0] : f32 from vector<1x1x1xf32>
      %21 = vector.broadcast %20 : f32 to vector<1x1xf32>
      %c0_13 = arith.constant 0 : index
      %c0_14 = arith.constant 0 : index
      %c0_15 = arith.constant 0 : index
      %22 = vector.load %arg6[%c0_13, %c0_14, %c0_15] : memref<1x1x1xf32, #tpu.memory_space<vmem>>, vector<1x1x1xf32>
      %23 = vector.shape_cast %22 : vector<1x1x1xf32> to vector<1x1xf32>
      %24 = vector.shape_cast %21 : vector<1x1xf32> to vector<1x1x1xf32>
      tpu.vector_store %arg6[%c0_13, %c0_14, %c0_15], %24 {strides = array<i32>} : memref<1x1x1xf32, #tpu.memory_space<vmem>>, vector<1x1x1xf32>,
      %c0_16 = arith.constant 0 : index
      %c0_17 = arith.constant 0 : index
      %25 = vector.load %arg3[%c0_16, %c0_17] : memref<32x5xf32, #tpu.memory_space<vmem>>, vector<32x5xf32>
      %26 = vector.broadcast %15 : vector<32x1xf32> to vector<32x5xf32>
      %27 = arith.mulf %26, %25 : vector<32x5xf32>
      %cst_18 = arith.constant dense<0.000000e+00> : vector<5xf32>
      %28 = vector.multi_reduction <add>, %27, %cst_18 [0] : vector<32x5xf32> to vector<5xf32>
      %29 = vector.shape_cast %28 : vector<5xf32> to vector<1x5xf32>
      %c0_19 = arith.constant 0 : index
      %c0_20 = arith.constant 0 : index
      %30 = vector.load %arg4[%c0_19, %c0_20] : memref<1x5xf32, #tpu.memory_space<vmem>>, vector<1x5xf32>
      %31 = arith.addf %29, %30 : vector<1x5xf32>
      %c0_21 = arith.constant 0 : index
      %c0_22 = arith.constant 0 : index
      %c0_23 = arith.constant 0 : index
      %32 = vector.load %arg5[%c0_21, %c0_22, %c0_23] : memref<1x1x5xf32, #tpu.memory_space<vmem>>, vector<1x1x5xf32>
      %33 = vector.shape_cast %32 : vector<1x1x5xf32> to vector<1x5xf32>
      %34 = vector.shape_cast %31 : vector<1x5xf32> to vector<1x1x5xf32>
      tpu.vector_store %arg5[%c0_21, %c0_22, %c0_23], %34 {strides = array<i32>} : memref<1x1x5xf32, #tpu.memory_space<vmem>>, vector<1x1x5xf32>,
    } else {
    }
    return
  }
  func.func @transform_0(%arg0: i32, %arg1: i32) -> (i32, i32, i32) {
    %c0_i32 = arith.constant 0 : i32
    %c0_i32_0 = arith.constant 0 : i32
    return %arg0, %c0_i32, %arg1 : i32, i32, i32
  }
  func.func @transform_1(%arg0: i32, %arg1: i32) -> (i32, i32) {
    %c0_i32 = arith.constant 0 : i32
    %c0_i32_0 = arith.constant 0 : i32
    %c0_i32_1 = arith.constant 0 : i32
    return %c0_i32, %c0_i32_0 : i32, i32
  }
  func.func @transform_2(%arg0: i32, %arg1: i32) -> (i32, i32) {
    %c0_i32 = arith.constant 0 : i32
    %c0_i32_0 = arith.constant 0 : i32
    %c0_i32_1 = arith.constant 0 : i32
    return %c0_i32, %c0_i32_0 : i32, i32
  }
  func.func @transform_3(%arg0: i32, %arg1: i32) -> (i32, i32, i32) {
    %c0_i32 = arith.constant 0 : i32
    %c0_i32_0 = arith.constant 0 : i32
    %c0_i32_1 = arith.constant 0 : i32
    return %arg0, %c0_i32, %c0_i32_0 : i32, i32, i32
  }
  func.func @transform_4(%arg0: i32, %arg1: i32) -> (i32, i32, i32) {
    %c0_i32 = arith.constant 0 : i32
    %c0_i32_0 = arith.constant 0 : i32
    %c0_i32_1 = arith.constant 0 : i32
    return %arg0, %c0_i32, %c0_i32_0 : i32, i32, i32
  }
}

</mosaic_0001>

<llo_original>
// kernel: tpu_custom_call.1
$region0: #{tpu_custom_call.1}
  #allocation0 [shape = 'u32[]', space=smem, size = 0x4, offset = 0x4, fixed_abs, tag = 'smem constant byte address 0x4 - core index']
  #allocation1 [shape = 'u32[144,128]{1,0:T(1,128)}', space=vmem, size = 0x12000, scoped, tag = 'internal scratch']
  #allocation2 [shape = 'f32[32,1]{1,0:T(8,128)}', space=vmem, size = 0x4000, scoped, tag = 'scratch operand']
  %s0 = inlined_call_operand.hbm [shape: f32[2,32,4096], index: 0, kind: input, shape index: {}]
  %s1 = inlined_call_operand.vmem [shape: f32[32,5], index: 1, kind: input, shape index: {}]
  %s2 = inlined_call_operand.vmem [shape: f32[1,5], index: 2, kind: input, shape index: {}]
  %s3 = inlined_call_operand.hbm [shape: f32[2,1,5], index: 3, kind: output, shape index: {0}]
  %s4 = inlined_call_operand.vmem [shape: f32[2,1,1], index: 4, kind: output, shape index: {1}]
  %5 = xla_tuple %s3, %s4
  %s6 = sld [smem:[#allocation0]]
  $region65: #{tpu_custom_call.1} parent=0
    _
  %s8 = ssub.s32 1, %s6
  %s9 = scalar_select 0, %s8, %s6
  $region1: #{tpu_custom_call.1} parent=0
    #allocation3 [shape = 'u8[1048576]{0}', space=vmem, size = 0x100000, scoped, tag = 'input window, operand 0']
    #allocation4 [shape = 's32[2]{0}', space=sflag, size = 0x8, scoped, tag = 'scoped memory for tpu_custom_call.1']
    #allocation5 [shape = 's32[2]{0}', space=sflag, size = 0x8, scoped, tag = 'scoped memory for tpu_custom_call.1']
    #allocation6 [shape = 'u8[1024]{0}', space=vmem, size = 0x400, scoped, tag = 'output window, operand 0']
    %10 = vsyncpa [#allocation4], 0
    %s11 = scalar_lea.sflag [#allocation4], 1
    %12 = vsyncpa %s11, 0
    %13 = vsyncpa [#allocation5], 0
    %s14 = scalar_lea.sflag [#allocation5], 1
    %15 = vsyncpa %s14, 0
    loop: start=0, step=1, limit=4
    $region2: #{tpu_custom_call.1} parent=1 // loop_pre_header
      _
    $region3: #{tpu_custom_call.1} parent=1 // loop_header
      %s17 = sphi 0, %s21
      %p18 = scmp.ge.s32.totalorder %s17, 4
      %s24 = sphi 0, %s36
      %s25 = sphi 0, %s32
      %s26 = sphi 0, %s24
      %s27 = sphi 0, %s25
      %s28 = sphi 0, %s26
      %s29 = sphi 0, %s27
      %s41 = sphi 0, %s43
      %s44 = sphi 0, %s41
      %s45 = sphi 0, %s44
      %s61 = sphi 0, %s45
      %s65 = sphi 0, %s65
      %s67 = sphi 0, %s65
      %s68 = sphi 0, %s67
      %s82 = sphi 0, %s68
      %s86 = sphi 0, %s86
      %s88 = sphi 0, %s86
      %s89 = sphi 0, %s88
      %s103 = sphi 0, %s89
      %s109 = sphi 0, %s111
      %s112 = sphi 0, %s109
      %s113 = sphi 0, %s112
      %s129 = sphi 0, %s113
      %s135 = sphi 0, %s137
      %s138 = sphi 0, %s135
      %s139 = sphi 0, %s138
      %s155 = sphi 0, %s139
    $region4: #{tpu_custom_call.1} parent=1 // loop_header_branch
      %20 = sbr.rel (%p18) target = $region8
    $region5: #{tpu_custom_call.1} parent=1 // loop_body
      %s22 = ssub.s32 %s17, 1
      %s23 = ssub.s32 %s17, 2
      %s30 = sadd.s32 1, %s25
      %p31 = scmp.ge.s32.totalorder %s30, 1
      %s32 = scalar_select %p31, 0, %s30
      %s33 = sadd.s32 1, %s24
      %s34 = scalar_select %p31, %s33, %s24
      %p35 = scmp.ge.s32.totalorder %s34, 2
      %s36 = scalar_select %p35, 0, %s34
      %s37 = ssub.s32 %s24, %s36
      %s38 = ssub.s32 %s25, %s32
      %s39 = sor.u32 %s37, %s38
      %p40 = scmp.eq.s32.totalorder %s39, 0
      %s42 = sadd.s32 %s41, 1
      %s43 = scalar_select %p40, %s41, %s42
      %p46 = pneg %p40
      %p47 = scmp.eq.s32.totalorder %s17, 1
      %p48 = por %p46, %p47
      %p49 = scmp.ne.s32.totalorder %s41, %s44
      %p50 = scmp.eq.s32.totalorder %s17, 0
      %p51 = por %p49, %p50
      %p52 = scmp.ne.s32.totalorder %s41, %s44
      %p53 = scmp.eq.s32.totalorder %s22, 1
      %p54 = por %p52, %p53
      %p55 = scmp.ne.s32.totalorder %s44, %s45
      %p56 = scmp.eq.s32.totalorder %s22, 0
      %p57 = por %p55, %p56
      %p58 = scmp.ne.s32.totalorder %s44, %s45
      %p59 = scmp.eq.s32.totalorder %s23, 1
      %p60 = por %p58, %p59
      %p62 = scmp.ne.s32.totalorder %s45, %s61
      %p63 = scmp.eq.s32.totalorder %s23, 0
      %p64 = por %p62, %p63
      %s66 = sadd.s32 %s65, 1
      %p69 = scmp.eq.s32.totalorder %s17, 1
      %p70 = scmp.ne.s32.totalorder %s65, %s67
      %p71 = scmp.eq.s32.totalorder %s17, 0
      %p72 = por %p70, %p71
      %p73 = scmp.ne.s32.totalorder %s65, %s67
      %p74 = scmp.eq.s32.totalorder %s22, 1
      %p75 = por %p73, %p74
      %p76 = scmp.ne.s32.totalorder %s67, %s68
      %p77 = scmp.eq.s32.totalorder %s22, 0
      %p78 = por %p76, %p77
      %p79 = scmp.ne.s32.totalorder %s67, %s68
      %p80 = scmp.eq.s32.totalorder %s23, 1
      %p81 = por %p79, %p80
      %p83 = scmp.ne.s32.totalorder %s68, %s82
      %p84 = scmp.eq.s32.totalorder %s23, 0
      %p85 = por %p83, %p84
      %s87 = sadd.s32 %s86, 1
      %p90 = scmp.eq.s32.totalorder %s17, 1
      %p91 = scmp.ne.s32.totalorder %s86, %s88
      %p92 = scmp.eq.s32.totalorder %s17, 0
      %p93 = por %p91, %p92
      %p94 = scmp.ne.s32.totalorder %s86, %s88
      %p95 = scmp.eq.s32.totalorder %s22, 1
      %p96 = por %p94, %p95
      %p97 = scmp.ne.s32.totalorder %s88, %s89
      %p98 = scmp.eq.s32.totalorder %s22, 0
      %p99 = por %p97, %p98
      %p100 = scmp.ne.s32.totalorder %s88, %s89
      %p101 = scmp.eq.s32.totalorder %s23, 1
      %p102 = por %p100, %p101
      %p104 = scmp.ne.s32.totalorder %s89, %s103
      %p105 = scmp.eq.s32.totalorder %s23, 0
      %p106 = por %p104, %p105
      %s107 = ssub.s32 %s24, %s36
      %p108 = scmp.eq.s32.totalorder %s107, 0
      %s110 = sadd.s32 %s109, 1
      %s111 = scalar_select %p108, %s109, %s110
      %p114 = pneg %p108
      %p115 = scmp.eq.s32.totalorder %s17, 1
      %p116 = por %p114, %p115
      %p117 = scmp.ne.s32.totalorder %s109, %s112
      %p118 = scmp.eq.s32.totalorder %s17, 0
      %p119 = por %p117, %p118
      %p120 = scmp.ne.s32.totalorder %s109, %s112
      %p121 = scmp.eq.s32.totalorder %s22, 1
      %p122 = por %p120, %p121
      %p123 = scmp.ne.s32.totalorder %s112, %s113
      %p124 = scmp.eq.s32.totalorder %s22, 0
      %p125 = por %p123, %p124
      %p126 = scmp.ne.s32.totalorder %s112, %s113
      %p127 = scmp.eq.s32.totalorder %s23, 1
      %p128 = por %p126, %p127
      %p130 = scmp.ne.s32.totalorder %s113, %s129
      %p131 = scmp.eq.s32.totalorder %s23, 0
      %p132 = por %p130, %p131
      %s133 = ssub.s32 %s24, %s36
      %p134 = scmp.eq.s32.totalorder %s133, 0
      %s136 = sadd.s32 %s135, 1
      %s137 = scalar_select %p134, %s135, %s136
      %p140 = pneg %p134
      %p141 = scmp.eq.s32.totalorder %s17, 1
      %p142 = por %p140, %p141
      %p143 = scmp.ne.s32.totalorder %s135, %s138
      %p144 = scmp.eq.s32.totalorder %s17, 0
      %p145 = por %p143, %p144
      %p146 = scmp.ne.s32.totalorder %s135, %s138
      %p147 = scmp.eq.s32.totalorder %s22, 1
      %p148 = por %p146, %p147
      %p149 = scmp.ne.s32.totalorder %s138, %s139
      %p150 = scmp.eq.s32.totalorder %s22, 0
      %p151 = por %p149, %p150
      %p152 = scmp.ne.s32.totalorder %s138, %s139
      %p153 = scmp.eq.s32.totalorder %s23, 1
      %p154 = por %p152, %p153
      %p156 = scmp.ne.s32.totalorder %s139, %s155
      %p157 = scmp.eq.s32.totalorder %s23, 0
      %p158 = por %p156, %p157
      %p159 = scmp.le.s32.totalorder 1, %s17
      %p160 = scmp.lt.s32.totalorder %s17, 3
      %p161 = pnand %p159, %p160
      %p162 = pneg %p161
      // Predicated region
      $region9: #{tpu_custom_call.1} parent=5 // pred_check
        _
      $region10: #{tpu_custom_call.1} parent=5 // pred_check_branch
        %164 = sbr.rel (%p161) target = $region12
      $region11: #{tpu_custom_call.1} parent=5 // pred_region
        %s165 = ssub.s32 %s17, 1
        // Predicated region
        $region13: #{tpu_custom_call.1} parent=11 // pred_check
          %p166 = pneg %p78
        $region14: #{tpu_custom_call.1} parent=11 // pred_check_branch
          %168 = sbr.rel (%p166) target = $region16
        $region15: #{tpu_custom_call.1} parent=11 // pred_region
          _
        $region16: #{tpu_custom_call.1} parent=11 // pred_fallthru
          _
        // Predicated region
        $region17: #{tpu_custom_call.1} parent=11 // pred_check
          %p169 = pneg %p99
        $region18: #{tpu_custom_call.1} parent=11 // pred_check_branch
          %171 = sbr.rel (%p169) target = $region20
        $region19: #{tpu_custom_call.1} parent=11 // pred_region
          _
        $region20: #{tpu_custom_call.1} parent=11 // pred_fallthru
          _
      $region12: #{tpu_custom_call.1} parent=5 // pred_fallthru
        _
      %p172 = scmp.lt.s32.totalorder %s17, 2
      // Predicated region
      $region21: #{tpu_custom_call.1} parent=5 // pred_check
        %p173 = pneg %p172
      $region22: #{tpu_custom_call.1} parent=5 // pred_check_branch
        %175 = sbr.rel (%p173) target = $region24
      $region23: #{tpu_custom_call.1} parent=5 // pred_region
        // Predicated region
        $region25: #{tpu_custom_call.1} parent=23 // pred_check
          %p176 = pneg %p51
        $region26: #{tpu_custom_call.1} parent=23 // pred_check_branch
          %178 = sbr.rel (%p176) target = $region28
        $region27: #{tpu_custom_call.1} parent=23 // pred_region
          %s179 = sand.u32 %s41, 1
          %s180 = scalar_lea.sflag [#allocation4], %s179
          %s181 = sand.u32 %s41, 1
          %s182 = smul.addr %s181, 1024
          %s183 = scalar_lea.vmem [#allocation3], %s182
          %s184 = smul.u32 32, %s25
          %s186 = ssub.s32 16384, 16384
          %187 = vsyncadd %s180, %s186
          %s188 = smul.addr %s24, 128
          %s189 = sadd.s32 %s184, %s188
          %s190 = smul.addr %s189, 128
          %s191 = scalar_lea.hbm %s0, %s190
          %s192 = sshll.u32 %s183, 4
          %s193 = int_to_ptr.vmem [resolvable:$true] %s192
          %198 = dma.hbm_to_vmem [thread:$0]  %s191, 16384, %s193, %s180, 4096, 4096, 256
        $region28: #{tpu_custom_call.1} parent=23 // pred_fallthru
          _
      $region24: #{tpu_custom_call.1} parent=5 // pred_fallthru
        _
      %p199 = scmp.le.s32.totalorder 1, %s17
      %p200 = scmp.lt.s32.totalorder %s17, 3
      %p201 = pnand %p199, %p200
      %p202 = pneg %p201
      // Predicated region
      $region29: #{tpu_custom_call.1} parent=5 // pred_check
        _
      $region30: #{tpu_custom_call.1} parent=5 // pred_check_branch
        %204 = sbr.rel (%p201) target = $region32
      $region31: #{tpu_custom_call.1} parent=5 // pred_region
        %s205 = ssub.s32 %s17, 1
        %s206 = sand.u32 %s44, 1
        %s207 = scalar_lea.sflag [#allocation4], %s206
        %s208 = sand.u32 %s44, 1
        %s209 = smul.addr %s208, 1024
        %s210 = scalar_lea.vmem [#allocation3], %s209
        // Predicated region
        $region33: #{tpu_custom_call.1} parent=31 // pred_check
          %p211 = pneg %p57
        $region34: #{tpu_custom_call.1} parent=31 // pred_check_branch
          %213 = sbr.rel (%p211) target = $region36
        $region35: #{tpu_custom_call.1} parent=31 // pred_region
          %214 = dma.done %s207, 16384
        $region36: #{tpu_custom_call.1} parent=31 // pred_fallthru
          _
        %s215 = sand.u32 %s44, 1
        %s216 = scalar_lea.sflag [#allocation4], %s215
        %s217 = sand.u32 %s44, 1
        %s218 = smul.addr %s217, 1024
        %s219 = scalar_lea.vmem [#allocation3], %s218
        %p220 = pneg %p57
        %p221 = pneg %p54
        %p222 = pneg %p78
        %p223 = pneg %p75
        %p224 = pneg %p99
        %p225 = pneg %p96
        %p226 = pneg %p125
        %p227 = pneg %p122
        %s228 = sand.u32 %s112, 1
        %s229 = scalar_lea.sflag [#allocation5], %s228
        %s230 = sand.u32 %s112, 1
        %s231 = scalar_lea.vmem [#allocation6], %s230
        %p232 = pneg %p151
        %p233 = pneg %p148
        %p234 = scmp.lt.s32.totalorder %s26, 1
        %s235 = scalar_select %p234, %s26, 1
        %s236 = scalar_lea.vmem %s4, %s235
        %s237 = smul.u32 32, %s27
        %p238 = scmp.lt.s32.totalorder %s26, 1
        %s239 = scalar_select %p238, %s26, 1
        %s240 = scalar_lea.vmem %s4, %s239
        %p241 = scmp.eq.s32.totalorder %s27, 0
        // Predicated region
        $region37: #{tpu_custom_call.1} parent=31 // pred_check
          %p242 = pneg %p241
        $region38: #{tpu_custom_call.1} parent=31 // pred_check_branch
          %244 = sbr.rel (%p242) target = $region40
        $region39: #{tpu_custom_call.1} parent=31 // pred_region
          %vm245 = vcmask 7168
          %246 = vst.msk [vmem:[#allocation2] sm:$0xff] %vm245, 0.0
          %247 = vst.msk [vmem:[#allocation2 + $0x8] sm:$0xff] %vm245, 0.0
          %248 = vst.msk [vmem:[#allocation2 + $0x10] sm:$0xff] %vm245, 0.0
          %249 = vst.msk [vmem:[#allocation2 + $0x18] sm:$0xff] %vm245, 0.0
        $region40: #{tpu_custom_call.1} parent=31 // pred_fallthru
          _
        %v250 = vld [vmem:[%s210] sm:$0xff]
        %v251 = vld [vmem:[%s210 + $0x8] sm:$0xff]
        %v252 = vld [vmem:[%s210 + $0x10] sm:$0xff]
        %v253 = vld [vmem:[%s210 + $0x18] sm:$0xff]
        %v254 = vld [vmem:[%s210 + $0x20] sm:$0xff]
        %v255 = vld [vmem:[%s210 + $0x28] sm:$0xff]
        %v256 = vld [vmem:[%s210 + $0x30] sm:$0xff]
        %v257 = vld [vmem:[%s210 + $0x38] sm:$0xff]
        %v258 = vld [vmem:[%s210 + $0x40] sm:$0xff]
        %v259 = vld [vmem:[%s210 + $0x48] sm:$0xff]
        %v260 = vld [vmem:[%s210 + $0x50] sm:$0xff]
        %v261 = vld [vmem:[%s210 + $0x58] sm:$0xff]
        %v262 = vld [vmem:[%s210 + $0x60] sm:$0xff]
        %v263 = vld [vmem:[%s210 + $0x68] sm:$0xff]
        %v264 = vld [vmem:[%s210 + $0x70] sm:$0xff]
        %v265 = vld [vmem:[%s210 + $0x78] sm:$0xff]
        %v266 = vld [vmem:[%s210 + $0x80] sm:$0xff]
        %v267 = vld [vmem:[%s210 + $0x88] sm:$0xff]
        %v268 = vld [vmem:[%s210 + $0x90] sm:$0xff]
        %v269 = vld [vmem:[%s210 + $0x98] sm:$0xff]
        %v270 = vld [vmem:[%s210 + $0xa0] sm:$0xff]
        %v271 = vld [vmem:[%s210 + $0xa8] sm:$0xff]
        %v272 = vld [vmem:[%s210 + $0xb0] sm:$0xff]
        %v273 = vld [vmem:[%s210 + $0xb8] sm:$0xff]
        %v274 = vld [vmem:[%s210 + $0xc0] sm:$0xff]
        %v275 = vld [vmem:[%s210 + $0xc8] sm:$0xff]
        %v276 = vld [vmem:[%s210 + $0xd0] sm:$0xff]
        %v277 = vld [vmem:[%s210 + $0xd8] sm:$0xff]
        %v278 = vld [vmem:[%s210 + $0xe0] sm:$0xff]
        %v279 = vld [vmem:[%s210 + $0xe8] sm:$0xff]
        %v280 = vld [vmem:[%s210 + $0xf0] sm:$0xff]
        %v281 = vld [vmem:[%s210 + $0xf8] sm:$0xff]
        %v282 = vld [vmem:[%s210 + $0x100] sm:$0xff]
        %v283 = vld [vmem:[%s210 + $0x108] sm:$0xff]
        %v284 = vld [vmem:[%s210 + $0x110] sm:$0xff]
        %v285 = vld [vmem:[%s210 + $0x118] sm:$0xff]
        %v286 = vld [vmem:[%s210 + $0x120] sm:$0xff]
        %v287 = vld [vmem:[%s210 + $0x128] sm:$0xff]
        %v288 = vld [vmem:[%s210 + $0x130] sm:$0xff]
        %v289 = vld [vmem:[%s210 + $0x138] sm:$0xff]
        %v290 = vld [vmem:[%s210 + $0x140] sm:$0xff]
        %v291 = vld [vmem:[%s210 + $0x148] sm:$0xff]
        %v292 = vld [vmem:[%s210 + $0x150] sm:$0xff]
        %v293 = vld [vmem:[%s210 + $0x158] sm:$0xff]
        %v294 = vld [vmem:[%s210 + $0x160] sm:$0xff]
        %v295 = vld [vmem:[%s210 + $0x168] sm:$0xff]
        %v296 = vld [vmem:[%s210 + $0x170] sm:$0xff]
        %v297 = vld [vmem:[%s210 + $0x178] sm:$0xff]
        %v298 = vld [vmem:[%s210 + $0x180] sm:$0xff]
        %v299 = vld [vmem:[%s210 + $0x188] sm:$0xff]
        %v300 = vld [vmem:[%s210 + $0x190] sm:$0xff]
        %v301 = vld [vmem:[%s210 + $0x198] sm:$0xff]
        %v302 = vld [vmem:[%s210 + $0x1a0] sm:$0xff]
        %v303 = vld [vmem:[%s210 + $0x1a8] sm:$0xff]
        %v304 = vld [vmem:[%s210 + $0x1b0] sm:$0xff]
        %v305 = vld [vmem:[%s210 + $0x1b8] sm:$0xff]
        %v306 = vld [vmem:[%s210 + $0x1c0] sm:$0xff]
        %v307 = vld [vmem:[%s210 + $0x1c8] sm:$0xff]
        %v308 = vld [vmem:[%s210 + $0x1d0] sm:$0xff]
        %v309 = vld [vmem:[%s210 + $0x1d8] sm:$0xff]
        %v310 = vld [vmem:[%s210 + $0x1e0] sm:$0xff]
        %v311 = vld [vmem:[%s210 + $0x1e8] sm:$0xff]
        %v312 = vld [vmem:[%s210 + $0x1f0] sm:$0xff]
        %v313 = vld [vmem:[%s210 + $0x1f8] sm:$0xff]
        %v314 = vld [vmem:[%s210 + $0x200] sm:$0xff]
        %v315 = vld [vmem:[%s210 + $0x208] sm:$0xff]
        %v316 = vld [vmem:[%s210 + $0x210] sm:$0xff]
        %v317 = vld [vmem:[%s210 + $0x218] sm:$0xff]
        %v318 = vld [vmem:[%s210 + $0x220] sm:$0xff]
        %v319 = vld [vmem:[%s210 + $0x228] sm:$0xff]
        %v320 = vld [vmem:[%s210 + $0x230] sm:$0xff]
        %v321 = vld [vmem:[%s210 + $0x238] sm:$0xff]
        %v322 = vld [vmem:[%s210 + $0x240] sm:$0xff]
        %v323 = vld [vmem:[%s210 + $0x248] sm:$0xff]
        %v324 = vld [vmem:[%s210 + $0x250] sm:$0xff]
        %v325 = vld [vmem:[%s210 + $0x258] sm:$0xff]
        %v326 = vld [vmem:[%s210 + $0x260] sm:$0xff]
        %v327 = vld [vmem:[%s210 + $0x268] sm:$0xff]
        %v328 = vld [vmem:[%s210 + $0x270] sm:$0xff]
        %v329 = vld [vmem:[%s210 + $0x278] sm:$0xff]
        %v330 = vld [vmem:[%s210 + $0x280] sm:$0xff]
        %v331 = vld [vmem:[%s210 + $0x288] sm:$0xff]
        %v332 = vld [vmem:[%s210 + $0x290] sm:$0xff]
        %v333 = vld [vmem:[%s210 + $0x298] sm:$0xff]
        %v334 = vld [vmem:[%s210 + $0x2a0] sm:$0xff]
        %v335 = vld [vmem:[%s210 + $0x2a8] sm:$0xff]
        %v336 = vld [vmem:[%s210 + $0x2b0] sm:$0xff]
        %v337 = vld [vmem:[%s210 + $0x2b8] sm:$0xff]
        %v338 = vld [vmem:[%s210 + $0x2c0] sm:$0xff]
        %v339 = vld [vmem:[%s210 + $0x2c8] sm:$0xff]
        %v340 = vld [vmem:[%s210 + $0x2d0] sm:$0xff]
        %v341 = vld [vmem:[%s210 + $0x2d8] sm:$0xff]
        %v342 = vld [vmem:[%s210 + $0x2e0] sm:$0xff]
        %v343 = vld [vmem:[%s210 + $0x2e8] sm:$0xff]
        %v344 = vld [vmem:[%s210 + $0x2f0] sm:$0xff]
        %v345 = vld [vmem:[%s210 + $0x2f8] sm:$0xff]
        %v346 = vld [vmem:[%s210 + $0x300] sm:$0xff]
        %v347 = vld [vmem:[%s210 + $0x308] sm:$0xff]
        %v348 = vld [vmem:[%s210 + $0x310] sm:$0xff]
        %v349 = vld [vmem:[%s210 + $0x318] sm:$0xff]
        %v350 = vld [vmem:[%s210 + $0x320] sm:$0xff]
        %v351 = vld [vmem:[%s210 + $0x328] sm:$0xff]
        %v352 = vld [vmem:[%s210 + $0x330] sm:$0xff]
        %v353 = vld [vmem:[%s210 + $0x338] sm:$0xff]
        %v354 = vld [vmem:[%s210 + $0x340] sm:$0xff]
        %v355 = vld [vmem:[%s210 + $0x348] sm:$0xff]
        %v356 = vld [vmem:[%s210 + $0x350] sm:$0xff]
        %v357 = vld [vmem:[%s210 + $0x358] sm:$0xff]
        %v358 = vld [vmem:[%s210 + $0x360] sm:$0xff]
        %v359 = vld [vmem:[%s210 + $0x368] sm:$0xff]
        %v360 = vld [vmem:[%s210 + $0x370] sm:$0xff]
        %v361 = vld [vmem:[%s210 + $0x378] sm:$0xff]
        %v362 = vld [vmem:[%s210 + $0x380] sm:$0xff]
        %v363 = vld [vmem:[%s210 + $0x388] sm:$0xff]
        %v364 = vld [vmem:[%s210 + $0x390] sm:$0xff]
        %v365 = vld [vmem:[%s210 + $0x398] sm:$0xff]
        %v366 = vld [vmem:[%s210 + $0x3a0] sm:$0xff]
        %v367 = vld [vmem:[%s210 + $0x3a8] sm:$0xff]
        %v368 = vld [vmem:[%s210 + $0x3b0] sm:$0xff]
        %v369 = vld [vmem:[%s210 + $0x3b8] sm:$0xff]
        %v370 = vld [vmem:[%s210 + $0x3c0] sm:$0xff]
        %v371 = vld [vmem:[%s210 + $0x3c8] sm:$0xff]
        %v372 = vld [vmem:[%s210 + $0x3d0] sm:$0xff]
        %v373 = vld [vmem:[%s210 + $0x3d8] sm:$0xff]
        %v374 = vld [vmem:[%s210 + $0x3e0] sm:$0xff]
        %v375 = vld [vmem:[%s210 + $0x3e8] sm:$0xff]
        %v376 = vld [vmem:[%s210 + $0x3f0] sm:$0xff]
        %v377 = vld [vmem:[%s210 + $0x3f8] sm:$0xff]
        %v378 = vld [vmem:[#allocation2] sm:$0xff]
        %v379 = vld [vmem:[#allocation2 + $0x8] sm:$0xff]
        %v380 = vld [vmem:[#allocation2 + $0x10] sm:$0xff]
        %v381 = vld [vmem:[#allocation2 + $0x18] sm:$0xff]
        %v382 = vadd.f32 %v250, %v251
        %v383 = vadd.f32 %v382, %v252
        %v384 = vadd.f32 %v383, %v253
        %v385 = vadd.f32 %v384, %v254
        %v386 = vadd.f32 %v385, %v255
        %v387 = vadd.f32 %v386, %v256
        %v388 = vadd.f32 %v387, %v257
        %v389 = vadd.f32 %v388, %v258
        %v390 = vadd.f32 %v389, %v259
        %v391 = vadd.f32 %v390, %v260
        %v392 = vadd.f32 %v391, %v261
        %v393 = vadd.f32 %v392, %v262
        %v394 = vadd.f32 %v393, %v263
        %v395 = vadd.f32 %v394, %v264
        %v396 = vadd.f32 %v395, %v265
        %v397 = vadd.f32 %v396, %v266
        %v398 = vadd.f32 %v397, %v267
        %v399 = vadd.f32 %v398, %v268
        %v400 = vadd.f32 %v399, %v269
        %v401 = vadd.f32 %v400, %v270
        %v402 = vadd.f32 %v401, %v271
        %v403 = vadd.f32 %v402, %v272
        %v404 = vadd.f32 %v403, %v273
        %v405 = vadd.f32 %v404, %v274
        %v406 = vadd.f32 %v405, %v275
        %v407 = vadd.f32 %v406, %v276
        %v408 = vadd.f32 %v407, %v277
        %v409 = vadd.f32 %v408, %v278
        %v410 = vadd.f32 %v409, %v279
        %v411 = vadd.f32 %v410, %v280
        %v412 = vadd.f32 %v411, %v281
        %413 = vadd.xlane.f32.xlu0 %v412
        %v414 = vpop.xlane.xlu0 %413
        %v415 = vadd.f32 %v282, %v283
        %v416 = vadd.f32 %v415, %v284
        %v417 = vadd.f32 %v416, %v285
        %v418 = vadd.f32 %v417, %v286
        %v419 = vadd.f32 %v418, %v287
        %v420 = vadd.f32 %v419, %v288
        %v421 = vadd.f32 %v420, %v289
        %v422 = vadd.f32 %v421, %v290
        %v423 = vadd.f32 %v422, %v291
        %v424 = vadd.f32 %v423, %v292
        %v425 = vadd.f32 %v424, %v293
        %v426 = vadd.f32 %v425, %v294
        %v427 = vadd.f32 %v426, %v295
        %v428 = vadd.f32 %v427, %v296
        %v429 = vadd.f32 %v428, %v297
        %v430 = vadd.f32 %v429, %v298
        %v431 = vadd.f32 %v430, %v299
        %v432 = vadd.f32 %v431, %v300
        %v433 = vadd.f32 %v432, %v301
        %v434 = vadd.f32 %v433, %v302
        %v435 = vadd.f32 %v434, %v303
        %v436 = vadd.f32 %v435, %v304
        %v437 = vadd.f32 %v436, %v305
        %v438 = vadd.f32 %v437, %v306
        %v439 = vadd.f32 %v438, %v307
        %v440 = vadd.f32 %v439, %v308
        %v441 = vadd.f32 %v440, %v309
        %v442 = vadd.f32 %v441, %v310
        %v443 = vadd.f32 %v442, %v311
        %v444 = vadd.f32 %v443, %v312
        %v445 = vadd.f32 %v444, %v313
        %446 = vadd.xlane.f32.xlu0 %v445
        %v447 = vpop.xlane.xlu0 %446
        %v448 = vadd.f32 %v314, %v315
        %v449 = vadd.f32 %v448, %v316
        %v450 = vadd.f32 %v449, %v317
        %v451 = vadd.f32 %v450, %v318
        %v452 = vadd.f32 %v451, %v319
        %v453 = vadd.f32 %v452, %v320
        %v454 = vadd.f32 %v453, %v321
        %v455 = vadd.f32 %v454, %v322
        %v456 = vadd.f32 %v455, %v323
        %v457 = vadd.f32 %v456, %v324
        %v458 = vadd.f32 %v457, %v325
        %v459 = vadd.f32 %v458, %v326
        %v460 = vadd.f32 %v459, %v327
        %v461 = vadd.f32 %v460, %v328
        %v462 = vadd.f32 %v461, %v329
        %v463 = vadd.f32 %v462, %v330
        %v464 = vadd.f32 %v463, %v331
        %v465 = vadd.f32 %v464, %v332
        %v466 = vadd.f32 %v465, %v333
        %v467 = vadd.f32 %v466, %v334
        %v468 = vadd.f32 %v467, %v335
        %v469 = vadd.f32 %v468, %v336
        %v470 = vadd.f32 %v469, %v337
        %v471 = vadd.f32 %v470, %v338
        %v472 = vadd.f32 %v471, %v339
        %v473 = vadd.f32 %v472, %v340
        %v474 = vadd.f32 %v473, %v341
        %v475 = vadd.f32 %v474, %v342
        %v476 = vadd.f32 %v475, %v343
        %v477 = vadd.f32 %v476, %v344
        %v478 = vadd.f32 %v477, %v345
        %479 = vadd.xlane.f32.xlu0 %v478
        %v480 = vpop.xlane.xlu0 %479
        %v481 = vadd.f32 %v346, %v347
        %v482 = vadd.f32 %v481, %v348
        %v483 = vadd.f32 %v482, %v349
        %v484 = vadd.f32 %v483, %v350
        %v485 = vadd.f32 %v484, %v351
        %v486 = vadd.f32 %v485, %v352
        %v487 = vadd.f32 %v486, %v353
        %v488 = vadd.f32 %v487, %v354
        %v489 = vadd.f32 %v488, %v355
        %v490 = vadd.f32 %v489, %v356
        %v491 = vadd.f32 %v490, %v357
        %v492 = vadd.f32 %v491, %v358
        %v493 = vadd.f32 %v492, %v359
        %v494 = vadd.f32 %v493, %v360
        %v495 = vadd.f32 %v494, %v361
        %v496 = vadd.f32 %v495, %v362
        %v497 = vadd.f32 %v496, %v363
        %v498 = vadd.f32 %v497, %v364
        %v499 = vadd.f32 %v498, %v365
        %v500 = vadd.f32 %v499, %v366
        %v501 = vadd.f32 %v500, %v367
        %v502 = vadd.f32 %v501, %v368
        %v503 = vadd.f32 %v502, %v369
        %v504 = vadd.f32 %v503, %v370
        %v505 = vadd.f32 %v504, %v371
        %v506 = vadd.f32 %v505, %v372
        %v507 = vadd.f32 %v506, %v373
        %v508 = vadd.f32 %v507, %v374
        %v509 = vadd.f32 %v508, %v375
        %v510 = vadd.f32 %v509, %v376
        %v511 = vadd.f32 %v510, %v377
        %512 = vadd.xlane.f32.xlu0 %v511
        %v513 = vpop.xlane.xlu0 %512
        %v514 = vadd.f32 %v378, %v414
        %v515 = vadd.f32 %v379, %v447
        %v516 = vadd.f32 %v380, %v480
        %v517 = vadd.f32 %v381, %v513
        %vm518 = vcmask 7168
        %519 = vst.msk [vmem:[#allocation2] sm:$0xff] %vm518, %v514
        %520 = vst.msk [vmem:[#allocation2 + $0x8] sm:$0xff] %vm518, %v515
        %521 = vst.msk [vmem:[#allocation2 + $0x10] sm:$0xff] %vm518, %v516
        %522 = vst.msk [vmem:[#allocation2 + $0x18] sm:$0xff] %vm518, %v517
        // Predicated region
        $region41: #{tpu_custom_call.1} parent=31 // pred_check
          %p523 = pneg %p241
        $region42: #{tpu_custom_call.1} parent=31 // pred_check_branch
          %525 = sbr.rel (%p523) target = $region44
        $region43: #{tpu_custom_call.1} parent=31 // pred_region
          %v526 = vld [vmem:[#allocation2] sm:$0xff]
          %v527 = vld [vmem:[#allocation2 + $0x8] sm:$0xff]
          %v528 = vld [vmem:[#allocation2 + $0x10] sm:$0xff]
          %v529 = vld [vmem:[#allocation2 + $0x18] sm:$0xff]
          %v530 = vmul.f32 %v526, 0.00024414063
          %v531 = vmul.f32 %v527, 0.00024414063
          %v532 = vmul.f32 %v528, 0.00024414063
          %v533 = vmul.f32 %v529, 0.00024414063
          %v534 = vmul.f32 %v530, %v530
          %v535 = vmul.f32 %v531, %v531
          %v536 = vmul.f32 %v532, %v532
          %v537 = vmul.f32 %v533, %v533
          %v538 = vsel %vm518, %v534, 0.0
          %v539 = vsel %vm518, %v535, 0.0
          %v540 = vadd.f32 %v538, %v539
          %v541 = vsel %vm518, %v536, 0.0
          %v542 = vadd.f32 %v540, %v541
          %v543 = vsel %vm518, %v537, 0.0
          %v544 = vadd.f32 %v542, %v543
          %545 = vadd.xlane.f32.xlu0 %v544
          %v546 = vpop.xlane.xlu0 %545
          %v547 = vrot.slane %v546, 4
          %v548 = vadd.f32 %v546, %v547
          %v549 = vrot.slane %v548, 2
          %v550 = vadd.f32 %v548, %v549
          %v551 = vrot.slane %v550, 1
          %v552 = vadd.f32 %v550, %v551
          %s553 = vtos %v552
          %v554 = vstv %s553
          %vm555 = vcmask 0
          %556 = vst.msk [vmem:[%s240] sm:$0x1] %vm555, %v554
          %v557 = vld [vmem:[%s1] sm:$0xff]
          %v558 = vld [vmem:[%s1 + $0x8] sm:$0xff]
          %v559 = vld [vmem:[%s1 + $0x10] sm:$0xff]
          %v560 = vld [vmem:[%s1 + $0x18] sm:$0xff]
          %562 = vset.pattern.permute.xlu0 0
          %563 = vperm.xlu0 %562, %v530
          %v564 = vpop.permute.xlu0 %563
          %567 = vset.pattern.permute.xlu0 0
          %568 = vperm.xlu0 %567, %v531
          %v569 = vpop.permute.xlu0 %568
          %572 = vset.pattern.permute.xlu0 0
          %573 = vperm.xlu0 %572, %v532
          %v574 = vpop.permute.xlu0 %573
          %577 = vset.pattern.permute.xlu0 0
          %578 = vperm.xlu0 %577, %v533
          %v579 = vpop.permute.xlu0 %578
          %v581 = vmul.f32 %v564, %v557
          %v582 = vmul.f32 %v569, %v558
          %v583 = vmul.f32 %v574, %v559
          %v584 = vmul.f32 %v579, %v560
          %vm585 = vcmask 39936
          %v586 = vsel %vm585, %v581, 0.0
          %v587 = vsel %vm585, %v582, 0.0
          %v588 = vadd.f32 %v586, %v587
          %v589 = vsel %vm585, %v583, 0.0
          %v590 = vadd.f32 %v588, %v589
          %v591 = vsel %vm585, %v584, 0.0
          %v592 = vadd.f32 %v590, %v591
          %v593 = vrot.slane %v592, 4
          %v594 = vadd.f32 %v592, %v593
          %v595 = vrot.slane %v594, 2
          %v596 = vadd.f32 %v594, %v595
          %v597 = vrot.slane %v596, 1
          %v598 = vadd.f32 %v596, %v597
          %v599 = vld [vmem:[%s2] sm:$0x1]
          %v600 = vadd.f32 %v598, %v599
          %vm601 = vcmask 32768
          %602 = vst.msk [vmem:[%s231] sm:$0x1] %vm601, %v600
        $region44: #{tpu_custom_call.1} parent=31 // pred_fallthru
          _
        %s603 = sand.u32 %s112, 1
        %s604 = scalar_lea.sflag [#allocation5], %s603
        %s605 = sand.u32 %s112, 1
        %s606 = scalar_lea.vmem [#allocation6], %s605
        %p607 = scmp.lt.s32.totalorder %s26, 1
        %s608 = scalar_select %p607, %s26, 1
        %s609 = scalar_lea.vmem %s4, %s608
        // Predicated region
        $region45: #{tpu_custom_call.1} parent=31 // pred_check
          %p610 = pneg %p122
        $region46: #{tpu_custom_call.1} parent=31 // pred_check_branch
          %612 = sbr.rel (%p610) target = $region48
        $region47: #{tpu_custom_call.1} parent=31 // pred_region
          %s614 = ssub.s32 16, 16
          %615 = vsyncadd %s604, %s614
          %s616 = smul.addr %s26, 16
          %s617 = scalar_lea.hbm %s3, %s616
          %s619 = sshll.u32 %s606, 4
          %s620 = int_to_ptr.vmem [resolvable:$true] %s619
          %622 = dma.vmem_to_hbm [thread:$0]  %s620, 16, %s617, %s604
        $region48: #{tpu_custom_call.1} parent=31 // pred_fallthru
          _
        // Predicated region
        $region49: #{tpu_custom_call.1} parent=31 // pred_check
          %p623 = pneg %p148
        $region50: #{tpu_custom_call.1} parent=31 // pred_check_branch
          %625 = sbr.rel (%p623) target = $region52
        $region51: #{tpu_custom_call.1} parent=31 // pred_region
          _
        $region52: #{tpu_custom_call.1} parent=31 // pred_fallthru
          _
      $region32: #{tpu_custom_call.1} parent=5 // pred_fallthru
        _
      %p626 = scmp.le.s32.totalorder 2, %s17
      // Predicated region
      $region53: #{tpu_custom_call.1} parent=5 // pred_check
        %p627 = pneg %p626
      $region54: #{tpu_custom_call.1} parent=5 // pred_check_branch
        %629 = sbr.rel (%p627) target = $region56
      $region55: #{tpu_custom_call.1} parent=5 // pred_region
        %s630 = ssub.s32 %s17, 2
        // Predicated region
        $region57: #{tpu_custom_call.1} parent=55 // pred_check
          %p631 = pneg %p128
        $region58: #{tpu_custom_call.1} parent=55 // pred_check_branch
          %633 = sbr.rel (%p631) target = $region60
        $region59: #{tpu_custom_call.1} parent=55 // pred_region
          %s634 = sand.u32 %s113, 1
          %s635 = scalar_lea.sflag [#allocation5], %s634
          %s636 = sand.u32 %s113, 1
          %s637 = scalar_lea.vmem [#allocation6], %s636
          %638 = dma.done %s635, 16
        $region60: #{tpu_custom_call.1} parent=55 // pred_fallthru
          _
        // Predicated region
        $region61: #{tpu_custom_call.1} parent=55 // pred_check
          %p639 = pneg %p154
        $region62: #{tpu_custom_call.1} parent=55 // pred_check_branch
          %641 = sbr.rel (%p639) target = $region64
        $region63: #{tpu_custom_call.1} parent=55 // pred_region
          %p642 = scmp.lt.s32.totalorder %s28, 1
          %s643 = scalar_select %p642, %s28, 1
          %s644 = scalar_lea.vmem %s4, %s643
        $region64: #{tpu_custom_call.1} parent=55 // pred_fallthru
          _
      $region56: #{tpu_custom_call.1} parent=5 // pred_fallthru
        _
    $region6: #{tpu_custom_call.1} parent=1 // loop_footer
      %s21 = sadd.s32 1, %s17
    $region7: #{tpu_custom_call.1} parent=1 // loop_footer_branch
      %16 = sbr.rel target = $region3
    $region8: #{tpu_custom_call.1} parent=1 // loop_exit
      _
    %645 = vsyncpa [#allocation4], 1
    %s646 = scalar_lea.sflag [#allocation4], 1
    %647 = vsyncpa %s646, 1
    %648 = vsyncpa [#allocation5], 1
    %s649 = scalar_lea.sflag [#allocation5], 1
    %650 = vsyncpa %s649, 1

</llo_original>
